<compile_context>
chip_gen: v7x
topology: tpu7x:2x2x1
jax: 0.10.0
libtpu: 0.0.40
codegen_flags: <defaults>
</compile_context>

<pallas_src>
import math
from functools import lru_cache, partial, reduce as _reduce

import numpy as np
import jax
import jax.numpy as jnp
from jax.experimental import pallas as pl
from jax.experimental.pallas import tpu as pltpu


def _round_up(x: int, m: int) -> int:
    return ((x + m - 1) // m) * m


_STREAM_DTYPES = {"float32": jnp.float32, "bfloat16": jnp.bfloat16}


@lru_cache(maxsize=None)
def _vmem_budget_bytes() -> int:
    """Per-generation in-flight VMEM budget (v5e/v6e: 128 MiB phys, v7x: 64 MiB)."""
    try:
        cap = int(pltpu.get_tpu_info().vmem_capacity_bytes)
    except Exception:
        cap = 64 << 20  # conservative fallback: assume v7x physical VMEM
    return max(8 << 20, min(cap * 3 // 8, 48 << 20))


# ---------------------------------------------------------------------------
# Kernel
# ---------------------------------------------------------------------------
def _make_wd_kernel(g: int, g_pad: int, max_len: int, mode: str, acc_lanes: int):
    num_pairs = g * (g - 1) // 2
    inv_len = 1.0 / float(max_len)        # Python floats -> jaxpr literals
    inv_pairs = 1.0 / float(num_pairs)

    def kernel(mat_ref, out_ref, acc_ref):
        k = pl.program_id(0)

        @pl.when(k == 0)
        def _():
            acc_ref[...] = jnp.zeros_like(acc_ref)

        # Stream ONLY the group matrix tile; expand pairs in-register.
        # (bf16 streaming upcasts here — v5e's VPU has no bf16 ops.)
        m = mat_ref[...].astype(jnp.float32)                       # (G_pad, tl)
        col_ids = jax.lax.broadcasted_iota(jnp.int32, (g_pad, acc_lanes), 1)
        upd = None
        # NOTE: unrolled over anchor rows; num_group is expected to be small.
        for i in range(g - 1):
            # |row_j - row_i| for every j, summed over this lane tile.
            diff_sum = jnp.sum(jnp.abs(m - m[i:i + 1, :]), axis=-1,
                               keepdims=True)                      # (G_pad, 1)
            # Deposit into lane column i of the pairwise-distance matrix.
            contrib = jnp.where(col_ids == i, diff_sum, 0.0)       # (G_pad, acc_lanes)
            upd = contrib if upd is None else upd + contrib
        acc_ref[...] += upd          # single full-width RMW per grid step

        @pl.when(k == pl.num_programs(0) - 1)
        def _():
            per_pair = acc_ref[...] * inv_len                      # (G_pad, acc_lanes)
            row = jax.lax.broadcasted_iota(jnp.int32, per_pair.shape, 0)
            col = jax.lax.broadcasted_iota(jnp.int32, per_pair.shape, 1)
            # acc[j, i] holds dist(i, j); valid pairs are i < j < g.
            valid = (col < row) & (row < g)
            if mode == "mean":
                s = jnp.sum(jnp.where(valid, per_pair, 0.0), axis=-1,
                            keepdims=True)                         # (G_pad, 1)
                res = jnp.sum(s, axis=0, keepdims=True) * inv_pairs
            else:  # "max": mask with -inf so padded rows can never win
                mrow = jnp.max(jnp.where(valid, per_pair, float("-inf")),
                               axis=-1, keepdims=True)             # (G_pad, 1)
                res = jnp.max(mrow, axis=0, keepdims=True)
            out_ref[...] = res.astype(out_ref.dtype)

    return kernel


@lru_cache(maxsize=None)
def _build_wd_call(g, g_pad, l_pad, tl, max_len, mode, acc_lanes, vmem_limit):
    kernel = _make_wd_kernel(g=g, g_pad=g_pad, max_len=max_len, mode=mode,
                             acc_lanes=acc_lanes)
    grid_spec = pltpu.PrefetchScalarGridSpec(
        num_scalar_prefetch=0,
        grid=(l_pad // tl,),
        in_specs=[pl.BlockSpec((g_pad, tl), lambda k: (0, k))],
        out_specs=pl.BlockSpec((1, 1), lambda k: (0, 0)),
        scratch_shapes=[pltpu.VMEM((g_pad, acc_lanes), jnp.float32)],
    )
    return pl.pallas_call(
        kernel,
        out_shape=jax.ShapeDtypeStruct((1, 1), jnp.float32),
        grid_spec=grid_spec,
        compiler_params=pltpu.CompilerParams(
            dimension_semantics=("arbitrary",),
            vmem_limit_bytes=int(vmem_limit)),
    )


# ---------------------------------------------------------------------------
# Device-side glue (jitted once per static shape combo)
# ---------------------------------------------------------------------------
@partial(jax.jit, static_argnames=("g", "g_pad", "l_pad", "tl", "max_len",
                                   "mode", "acc_lanes", "vmem_limit",
                                   "stream_dtype"))
def _wd_device(batch_pred, gather_idx, *, g, g_pad, l_pad, tl, max_len, mode,
               acc_lanes, vmem_limit, stream_dtype):
    pred = batch_pred.astype(jnp.float32)
    # TODO(synk): sort has no Mosaic/Pallas lowering; the cyclic oversample +
    # per-group sort stays in the fused XLA glue feeding the kernel.
    mat = jnp.sort(pred[gather_idx], axis=-1)                      # (G, max_len)
    # Pad ONCE, on the G-row matrix, before anything pair-shaped could exist.
    mat = jnp.pad(mat, ((0, g_pad - g), (0, l_pad - max_len)))
    mat = mat.astype(_STREAM_DTYPES[stream_dtype])
    call = _build_wd_call(g, g_pad, l_pad, tl, max_len, mode, acc_lanes,
                          vmem_limit)
    return call(mat)[0, 0]


# ---------------------------------------------------------------------------
# Host-side partition (cached) + public wrapper
# ---------------------------------------------------------------------------
_PARTITION_CACHE: dict = {}


def _partition(np_group: np.ndarray, num_group: int, lcm: bool):
    key = (np_group.tobytes(), np_group.dtype.str, int(num_group), bool(lcm))
    hit = _PARTITION_CACHE.get(key)
    if hit is not None:
        return hit
    group_idx = [np.where(np_group == i)[0] for i in range(num_group)]
    # Drop empty groups up-front (matches the torch try/except skip and keeps
    # lcm well defined when a group is missing from the batch).
    group_idx = [ix for ix in group_idx if len(ix) > 0]
    group_len = [len(ix) for ix in group_idx]
    if len(group_idx) < 2:
        raise ValueError("need at least two non-empty groups")
    if lcm:
        max_len = _reduce(lambda a, b: a * b // math.gcd(a, b), group_len)
    else:
        max_len = max(group_len)
    # Cyclic oversampling == repeat(expansion_factor)[:max_len].
    gather_idx = np.stack(
        [np.asarray(ix, np.int32)[np.arange(max_len) % n]
         for ix, n in zip(group_idx, group_len)], axis=0).astype(np.int32)
    out = (gather_idx, int(max_len), len(group_idx))
    _PARTITION_CACHE[key] = out
    return out


def prediction_oversampling_wd_loss(batch_pred, batch_group, *, num_group: int,
                                    mode: str = "mean", lcm: bool = False,
                                    stream_dtype: str = "float32"):
    """JAX/Pallas equivalent of PredictionOversamplingWDLoss.forward.

    stream_dtype="bfloat16" halves HBM traffic of the HBM-bound main loop
    (upcast to f32 inside the kernel) at a small accuracy cost.
    """
    if mode not in ("mean", "max"):
        raise ValueError(mode)
    if stream_dtype not in _STREAM_DTYPES:
        raise ValueError(stream_dtype)

    # TODO(synk): the data-dependent group partition (python loop of
    # torch.where) needs the labels on host; the partition result is cached
    # per label pattern so repeated steps only pay the transfer.
    np_group = np.asarray(jax.device_get(batch_group))
    gather_idx, max_len, g = _partition(np_group, num_group, lcm)

    # Static padding / tiling parameters.
    g_pad = _round_up(g, 8)
    acc_lanes = _round_up(max(g - 1, 1), 128)
    itemsize = 2 if stream_dtype == "bfloat16" else 4
    budget = _vmem_budget_bytes()
    # ~4 MiB per-buffer blocks sit on the HBM-roofline plateau; never take
    # more than double-buffering leaves room for on this generation.
    block_cap = min(4 << 20, budget // 3)
    tl_cap = max(128, (block_cap // (g_pad * itemsize)) // 128 * 128)
    l128 = _round_up(max_len, 128)
    tl = min(l128, tl_cap)
    l_pad = _round_up(l128, tl)
    needed = 2 * g_pad * tl * itemsize + g_pad * acc_lanes * 4 + (2 << 20)
    vmem_limit = int(min(budget, max(needed, 16 << 20)))

    return _wd_device(
        jnp.asarray(batch_pred),
        jnp.asarray(gather_idx),
        g=g, g_pad=g_pad, l_pad=l_pad, tl=tl, max_len=max_len, mode=mode,
        acc_lanes=acc_lanes, vmem_limit=vmem_limit, stream_dtype=stream_dtype)


# ---------------------------------------------------------------------------
# Reference + self-test
# ---------------------------------------------------------------------------
def _reference(batch_pred, batch_group, num_group, mode, lcm):
    """Pure numpy re-implementation of the torch module."""
    pred = np.asarray(batch_pred, np.float64)
    grp = np.asarray(batch_group)
    groups = [pred[grp == i] for i in range(num_group)]
    groups = [gp for gp in groups if len(gp) > 0]
    lens = [len(gp) for gp in groups]
    if lcm:
        max_len = _reduce(lambda a, b: a * b // math.gcd(a, b), lens)
    else:
        max_len = max(lens)
    exp = [np.sort(gp[np.arange(max_len) % len(gp)]) for gp in groups]
    dists = []
    for i in range(len(exp) - 1):
        for j in range(i + 1, len(exp)):
            dists.append(np.mean(np.abs(exp[i] - exp[j])))
    return np.mean(dists) if mode == "mean" else np.max(dists)


if __name__ == "__main__":
    key = jax.random.PRNGKey(0)
    k_pred, k_perm = jax.random.split(key)

    num_group = 4
    # Deterministic, unequal group sizes: 10 / 14 / 20 / 20, fixed shuffle.
    sizes = [10, 14, 20, 20]
    grp_np = np.concatenate([np.full(s, i, np.int32) for i, s in enumerate(sizes)])
    perm = np.asarray(jax.device_get(jax.random.permutation(k_perm, grp_np.shape[0])))
    grp_np = grp_np[perm]

    batch_group = jnp.asarray(grp_np)
    batch_pred = jax.random.normal(k_pred, (grp_np.shape[0],), dtype=jnp.float32)
    pred_np = np.asarray(jax.device_get(batch_pred))

    for mode, lcm in [("mean", False), ("max", False), ("mean", True), ("max", True)]:
        out = jax.block_until_ready(prediction_oversampling_wd_loss(
            batch_pred, batch_group, num_group=num_group, mode=mode, lcm=lcm))
        ref = _reference(pred_np, grp_np, num_group, mode, lcm)
        assert np.allclose(np.asarray(out), ref, rtol=1e-4, atol=1e-5), \
            (mode, lcm, float(out), float(ref))

    # bf16 streaming path (half the DMA bytes); looser tolerance.
    out_bf16 = jax.block_until_ready(prediction_oversampling_wd_loss(
        batch_pred, batch_group, num_group=num_group, mode="mean", lcm=False,
        stream_dtype="bfloat16"))
    ref = _reference(pred_np, grp_np, num_group, "mean", False)
    assert np.allclose(np.asarray(out_bf16), ref, rtol=5e-2, atol=5e-3), \
        (float(out_bf16), float(ref))

    # Repeat call: hits the partition cache + jit cache + pallas_call cache.
    jax.block_until_ready(prediction_oversampling_wd_loss(
        batch_pred, batch_group, num_group=num_group, mode="mean", lcm=False))

    print("KERNEL_OK")
</pallas_src>

<mosaic_0001>
module attributes {stable_mosaic.version = 11 : i64} {
  func.func @kernel(%arg0: i32, %arg1: memref<8x128xf32, #tpu.memory_space<vmem>>, %arg2: memref<1x1xf32, #tpu.memory_space<vmem>>, %arg3: memref<8x128xf32, #tpu.memory_space<vmem>>) attributes {dimension_semantics = [#tpu.dimension_semantics<arbitrary>], iteration_bounds = array<i64: 1>, scalar_prefetch = 0 : i64, scratch_operands = 1 : i64, tpu.core_type = #tpu.core_type<tc>, window_params = [{transform_indices = @transform_0, window_bounds = array<i64: 8, 128>}, {pipeline_mode = #tpu.pipeline_mode<synchronous>, transform_indices = @transform_1, window_bounds = array<i64: 1, 1>}]} {
    %c0_i32 = arith.constant 0 : i32
    %0 = arith.cmpi eq, %arg0, %c0_i32 : i32
    %1 = arith.extui %0 : i1 to i32
    %c0_i32_0 = arith.constant 0 : i32
    %2 = arith.cmpi ne, %1, %c0_i32_0 : i32
    scf.if %2 {
      %cst_14 = arith.constant 0.000000e+00 : f32
      %49 = vector.broadcast %cst_14 : f32 to vector<8x128xf32>
      %c0_15 = arith.constant 0 : index
      %c0_16 = arith.constant 0 : index
      %50 = vector.load %arg3[%c0_15, %c0_16] : memref<8x128xf32, #tpu.memory_space<vmem>>, vector<8x128xf32>
      tpu.vector_store %arg3[%c0_15, %c0_16], %49 {strides = array<i32>} : memref<8x128xf32, #tpu.memory_space<vmem>>, vector<8x128xf32>,
    } else {
    }
    %c0 = arith.constant 0 : index
    %c0_1 = arith.constant 0 : index
    %3 = vector.load %arg1[%c0, %c0_1] : memref<8x128xf32, #tpu.memory_space<vmem>>, vector<8x128xf32>
    %4 = tpu.iota {dimensions = array<i32: 1>} : vector<8x128xi32>
    %5 = vector.extract_strided_slice %3 {offsets = [0, 0], sizes = [1, 128], strides = [1, 1]} : vector<8x128xf32> to vector<1x128xf32>
    %6 = vector.broadcast %5 : vector<1x128xf32> to vector<8x128xf32>
    %7 = arith.subf %3, %6 : vector<8x128xf32>
    %8 = math.absf %7 : vector<8x128xf32>
    %cst = arith.constant dense<0.000000e+00> : vector<8xf32>
    %9 = vector.multi_reduction <add>, %8, %cst [1] : vector<8x128xf32> to vector<8xf32>
    %10 = vector.shape_cast %9 : vector<8xf32> to vector<8x1xf32>
    %c0_i32_2 = arith.constant 0 : i32
    %11 = vector.broadcast %c0_i32_2 : i32 to vector<8x128xi32>
    %12 = arith.cmpi eq, %4, %11 : vector<8x128xi32>
    %cst_3 = arith.constant 0.000000e+00 : f32
    %13 = vector.shape_cast %10 : vector<8x1xf32> to vector<8x1xf32>
    %14 = vector.broadcast %13 : vector<8x1xf32> to vector<8x128xf32>
    %15 = vector.broadcast %cst_3 : f32 to vector<8x128xf32>
    %16 = arith.select %12, %14, %15 : vector<8x128xi1>, vector<8x128xf32>
    %17 = vector.extract_strided_slice %3 {offsets = [1, 0], sizes = [1, 128], strides = [1, 1]} : vector<8x128xf32> to vector<1x128xf32>
    %18 = vector.broadcast %17 : vector<1x128xf32> to vector<8x128xf32>
    %19 = arith.subf %3, %18 : vector<8x128xf32>
    %20 = math.absf %19 : vector<8x128xf32>
    %cst_4 = arith.constant dense<0.000000e+00> : vector<8xf32>
    %21 = vector.multi_reduction <add>, %20, %cst_4 [1] : vector<8x128xf32> to vector<8xf32>
    %22 = vector.shape_cast %21 : vector<8xf32> to vector<8x1xf32>
    %c1_i32 = arith.constant 1 : i32
    %23 = vector.broadcast %c1_i32 : i32 to vector<8x128xi32>
    %24 = arith.cmpi eq, %4, %23 : vector<8x128xi32>
    %cst_5 = arith.constant 0.000000e+00 : f32
    %25 = vector.shape_cast %22 : vector<8x1xf32> to vector<8x1xf32>
    %26 = vector.broadcast %25 : vector<8x1xf32> to vector<8x128xf32>
    %27 = vector.broadcast %cst_5 : f32 to vector<8x128xf32>
    %28 = arith.select %24, %26, %27 : vector<8x128xi1>, vector<8x128xf32>
    %29 = arith.addf %16, %28 : vector<8x128xf32>
    %30 = vector.extract_strided_slice %3 {offsets = [2, 0], sizes = [1, 128], strides = [1, 1]} : vector<8x128xf32> to vector<1x128xf32>
    %31 = vector.broadcast %30 : vector<1x128xf32> to vector<8x128xf32>
    %32 = arith.subf %3, %31 : vector<8x128xf32>
    %33 = math.absf %32 : vector<8x128xf32>
    %cst_6 = arith.constant dense<0.000000e+00> : vector<8xf32>
    %34 = vector.multi_reduction <add>, %33, %cst_6 [1] : vector<8x128xf32> to vector<8xf32>
    %35 = vector.shape_cast %34 : vector<8xf32> to vector<8x1xf32>
    %c2_i32 = arith.constant 2 : i32
    %36 = vector.broadcast %c2_i32 : i32 to vector<8x128xi32>
    %37 = arith.cmpi eq, %4, %36 : vector<8x128xi32>
    %cst_7 = arith.constant 0.000000e+00 : f32
    %38 = vector.shape_cast %35 : vector<8x1xf32> to vector<8x1xf32>
    %39 = vector.broadcast %38 : vector<8x1xf32> to vector<8x128xf32>
    %40 = vector.broadcast %cst_7 : f32 to vector<8x128xf32>
    %41 = arith.select %37, %39, %40 : vector<8x128xi1>, vector<8x128xf32>
    %42 = arith.addf %29, %41 : vector<8x128xf32>
    %c0_8 = arith.constant 0 : index
    %c0_9 = arith.constant 0 : index
    %43 = vector.load %arg3[%c0_8, %c0_9] : memref<8x128xf32, #tpu.memory_space<vmem>>, vector<8x128xf32>
    %44 = arith.addf %43, %42 : vector<8x128xf32>
    %c0_10 = arith.constant 0 : index
    %c0_11 = arith.constant 0 : index
    %45 = vector.load %arg3[%c0_10, %c0_11] : memref<8x128xf32, #tpu.memory_space<vmem>>, vector<8x128xf32>
    tpu.vector_store %arg3[%c0_10, %c0_11], %44 {strides = array<i32>} : memref<8x128xf32, #tpu.memory_space<vmem>>, vector<8x128xf32>,
    %c0_i32_12 = arith.constant 0 : i32
    %46 = arith.cmpi eq, %arg0, %c0_i32_12 : i32
    %47 = arith.extui %46 : i1 to i32
    %c0_i32_13 = arith.constant 0 : i32
    %48 = arith.cmpi ne, %47, %c0_i32_13 : i32
    scf.if %48 {
      %c0_14 = arith.constant 0 : index
      %c0_15 = arith.constant 0 : index
      %49 = vector.load %arg3[%c0_14, %c0_15] : memref<8x128xf32, #tpu.memory_space<vmem>>, vector<8x128xf32>
      %cst_16 = arith.constant 5.000000e-02 : f32
      %50 = vector.broadcast %cst_16 : f32 to vector<8x128xf32>
      %51 = arith.mulf %49, %50 : vector<8x128xf32>
      %52 = tpu.iota {dimensions = array<i32: 0>} : vector<8x128xi32>
      %53 = tpu.iota {dimensions = array<i32: 1>} : vector<8x128xi32>
      %54 = arith.cmpi slt, %53, %52 : vector<8x128xi32>
      %c4_i32 = arith.constant 4 : i32
      %55 = vector.broadcast %c4_i32 : i32 to vector<8x128xi32>
      %56 = arith.cmpi slt, %52, %55 : vector<8x128xi32>
      %57 = arith.andi %54, %56 : vector<8x128xi1>
      %cst_17 = arith.constant 0.000000e+00 : f32
      %58 = vector.broadcast %cst_17 : f32 to vector<8x128xf32>
      %59 = arith.select %57, %51, %58 : vector<8x128xi1>, vector<8x128xf32>
      %cst_18 = arith.constant dense<0.000000e+00> : vector<8xf32>
      %60 = vector.multi_reduction <add>, %59, %cst_18 [1] : vector<8x128xf32> to vector<8xf32>
      %61 = vector.shape_cast %60 : vector<8xf32> to vector<8x1xf32>
      %cst_19 = arith.constant dense<0.000000e+00> : vector<1xf32>
      %62 = vector.multi_reduction <add>, %61, %cst_19 [0] : vector<8x1xf32> to vector<1xf32>
      %63 = vector.shape_cast %62 : vector<1xf32> to vector<1x1xf32>
      %cst_20 = arith.constant 0.166666672 : f32
      %64 = vector.broadcast %cst_20 : f32 to vector<1x1xf32>
      %65 = arith.mulf %63, %64 : vector<1x1xf32>
      %c0_21 = arith.constant 0 : index
      %c0_22 = arith.constant 0 : index
      %66 = vector.load %arg2[%c0_21, %c0_22] : memref<1x1xf32, #tpu.memory_space<vmem>>, vector<1x1xf32>
      tpu.vector_store %arg2[%c0_21, %c0_22], %65 {strides = array<i32>} : memref<1x1xf32, #tpu.memory_space<vmem>>, vector<1x1xf32>,
    } else {
    }
    return
  }
  func.func @transform_0(%arg0: i32) -> (i32, i32) {
    %c0_i32 = arith.constant 0 : i32
    %c0_i32_0 = arith.constant 0 : i32
    return %c0_i32, %arg0 : i32, i32
  }
  func.func @transform_1(%arg0: i32) -> (i32, i32) {
    %c0_i32 = arith.constant 0 : i32
    %c0_i32_0 = arith.constant 0 : i32
    %c0_i32_1 = arith.constant 0 : i32
    return %c0_i32, %c0_i32_0 : i32, i32
  }
}

</mosaic_0001>

<llo_original>
// kernel: _wd_device.1
$region0: #{_wd_device.1}
  #allocation0 [shape = 'u32[]', space=smem, size = 0x4, offset = 0x4, fixed_abs, tag = 'smem constant byte address 0x4 - core index']
  #allocation1 [shape = 'u32[144,128]{1,0:T(1,128)}', space=vmem, size = 0x12000, scoped, tag = 'internal scratch']
  #allocation2 [shape = 'f32[8,128]{1,0:T(8,128)}', space=vmem, size = 0x1000, scoped, tag = 'scratch operand']
  %s0 = inlined_call_operand.vmem [shape: f32[8,128], index: 0, kind: input, shape index: {}]
  %s1 = inlined_call_operand.hbm [shape: f32[1,1], index: 1, kind: output, shape index: {}]
  %s2 = sld [smem:[#allocation0]]
  $region22: #{_wd_device.1} parent=0
    _
  %s4 = ssub.s32 1, %s2
  %s5 = scalar_select 0, %s4, %s2
  $region1: #{_wd_device.1} parent=0
    #allocation3 [shape = 'u8[512]{0}', space=vmem, size = 0x400, scoped, tag = 'output window, operand 0, single buffered']
    #allocation4 [shape = 's32[1]{0}', space=sflag, size = 0x4, scoped, tag = 'scoped memory for _wd_device.1']
    %6 = vsyncpa [#allocation4], 0
    // Predicated region
    $region2: #{_wd_device.1} parent=1 // pred_check
      _
    $region3: #{_wd_device.1} parent=1 // pred_check_branch
      %8 = sbr.rel (0) target = $region5
    $region4: #{_wd_device.1} parent=1 // pred_region
      _
    $region5: #{_wd_device.1} parent=1 // pred_fallthru
      _
    %p9 = scmp.eq.s32.totalorder 0, 0
    // Predicated region
    $region6: #{_wd_device.1} parent=1 // pred_check
      %p10 = pneg %p9
    $region7: #{_wd_device.1} parent=1 // pred_check_branch
      %12 = sbr.rel (%p10) target = $region9
    $region8: #{_wd_device.1} parent=1 // pred_region
      %13 = vst [vmem:[#allocation2] sm:$0xff] 0.0
    $region9: #{_wd_device.1} parent=1 // pred_fallthru
      _
    %v14 = vld [vmem:[%s0] sm:$0xff]
    %v15 = vlaneseq
    %v16 = vand.u32 %v15, 127
    %v17 = vlaneseq
    %v18 = vshrl.u32 %v17, 7
    %v19 = vsub.s32 0, %v18
    %v20 = vrot.slane %v14, %v19
    %v21 = vsub.f32 %v14, %v20
    %v22 = vand.u32 2147483647, %v21
    %23 = vadd.xlane.f32.xlu0 %v22
    %v24 = vpop.xlane.xlu0 %23
    %vm25 = vcmp.eq.s32.totalorder %v16, 0
    %v26 = vsel %vm25, %v24, 0.0
    %v27 = vlaneseq
    %v28 = vshrl.u32 %v27, 7
    %v29 = vsub.s32 1, %v28
    %v30 = vrot.slane %v14, %v29
    %v31 = vsub.f32 %v14, %v30
    %v32 = vand.u32 2147483647, %v31
    %33 = vadd.xlane.f32.xlu0 %v32
    %v34 = vpop.xlane.xlu0 %33
    %vm35 = vcmp.eq.s32.totalorder %v16, 1
    %v36 = vsel %vm35, %v34, 0.0
    %v37 = vadd.f32 %v26, %v36
    %v38 = vlaneseq
    %v39 = vshrl.u32 %v38, 7
    %v40 = vsub.s32 2, %v39
    %v41 = vrot.slane %v14, %v40
    %v42 = vsub.f32 %v14, %v41
    %v43 = vand.u32 2147483647, %v42
    %44 = vadd.xlane.f32.xlu0 %v43
    %v45 = vpop.xlane.xlu0 %44
    %vm46 = vcmp.eq.s32.totalorder %v16, 2
    %v47 = vsel %vm46, %v45, 0.0
    %v48 = vadd.f32 %v37, %v47
    %v49 = vld [vmem:[#allocation2] sm:$0xff]
    %v50 = vadd.f32 %v49, %v48
    %51 = vst [vmem:[#allocation2] sm:$0xff] %v50
    // Predicated region
    $region10: #{_wd_device.1} parent=1 // pred_check
      %p52 = pneg %p9
    $region11: #{_wd_device.1} parent=1 // pred_check_branch
      %54 = sbr.rel (%p52) target = $region13
    $region12: #{_wd_device.1} parent=1 // pred_region
      %v55 = vld [vmem:[#allocation2] sm:$0xff]
      %v56 = vmul.f32 %v55, 0.05
      %v57 = vlaneseq
      %v58 = vshrl.u32 %v57, 7
      %vm59 = vcmp.lt.s32.totalorder %v16, %v58
      %vm60 = vcmp.lt.s32.totalorder %v58, 4
      %vm61 = vmand %vm59, %vm60
      %v62 = vsel %vm61, %v56, 0.0
      %63 = vadd.xlane.f32.xlu0 %v62
      %v64 = vpop.xlane.xlu0 %63
      %v65 = vrot.slane %v64, 4
      %v66 = vadd.f32 %v64, %v65
      %v67 = vrot.slane %v66, 2
      %v68 = vadd.f32 %v66, %v67
      %v69 = vrot.slane %v68, 1
      %v70 = vadd.f32 %v68, %v69
      %v71 = vmul.f32 %v70, 0.16666667
      %vm72 = vcmask 0
      %73 = vst.msk [vmem:[#allocation3] sm:$0x1] %vm72, %v71
    $region13: #{_wd_device.1} parent=1 // pred_fallthru
      _
    // Predicated region
    $region14: #{_wd_device.1} parent=1 // pred_check
      _
    $region15: #{_wd_device.1} parent=1 // pred_check_branch
      %75 = sbr.rel (0) target = $region17
    $region16: #{_wd_device.1} parent=1 // pred_region
      %s77 = ssub.s32 16, 16
      %78 = vsyncadd [#allocation4], %s77
      %s80 = sshll.u32 [#allocation3], 4
      %s81 = int_to_ptr.vmem [resolvable:$true] %s80
      %83 = dma.vmem_to_hbm [thread:$0]  %s81, 16, %s1, [#allocation4]
    $region17: #{_wd_device.1} parent=1 // pred_fallthru
      _
    // Predicated region
    $region18: #{_wd_device.1} parent=1 // pred_check
      _
    $region19: #{_wd_device.1} parent=1 // pred_check_branch
      %85 = sbr.rel (0) target = $region21
    $region20: #{_wd_device.1} parent=1 // pred_region
      %86 = dma.done [#allocation4], 16
    $region21: #{_wd_device.1} parent=1 // pred_fallthru
      _
    %87 = vsyncpa [#allocation4], 1

</llo_original>
